<compile_context>
chip_gen: v5e
topology: v5e:2x2
jax: 0.10.0
libtpu: 0.0.40
codegen_flags: <defaults>
</compile_context>

<pallas_src>
import functools

import jax
import jax.numpy as jnp
from jax.experimental import pallas as pl
from jax.experimental.pallas import tpu as pltpu

_LANES = 128
_SUBLANES = 8
# 4096 rows * 128 lanes * 4 B = 2 MiB per input per tile (= 131072 boxes/tile).
_MAX_TILE_ROWS = 4096

# Lane l of a row holds component (l % 4) of box (row*32 + l//4).  The roll
# based pairing below is only valid because 128 % 4 == 0 (components never
# straddle a row and partners never leave their 4-lane box group).
assert _LANES % 4 == 0


def _fold_to_8(x):
    """Column-preserving sum of an (r, 128) f32 block down to (8, 128).

    r must be a multiple of 8.  Uses only sublane-aligned 2-D slices + adds
    (a vreg add tree), so no accumulator load/store per vreg and no 3-D
    reshapes.
    """
    r = x.shape[0]
    # Halve while both halves stay sublane aligned (power-of-two tiles).
    while r > 8 and (r // 2) % 8 == 0:
        half = r // 2
        x = x[:half, :] + x[half:, :]
        r = half
    if r > 8:
        acc = x[:8, :]
        for k in range(1, r // 8):
            acc = acc + x[8 * k:8 * (k + 1), :]
        x = acc
    return x


def _box_loss_kernel(gt_ref, pred_ref, out_ref, acc_ref, *, inv_n, last_rows):
    # gt_ref / pred_ref: (tile_rows, 128) f32 VMEM tiles of the flat inputs.
    #   lane % 4 == 0: x0 / x_center    1: y0 / y_center
    #               2: x1 / w           3: y1 / h
    # out_ref: (5,) f32 SMEM -> [loss, loss_xx, loss_yy, loss_ww, loss_hh]
    # acc_ref: (8, 128) f32 VMEM accumulator of folded per-(sublane,lane) |err|.
    tile_rows = gt_ref.shape[0]
    i = pl.program_id(0)
    nt = pl.num_programs(0)

    @pl.when(i == 0)
    def _init():
        acc_ref[...] = jnp.zeros_like(acc_ref)

    gt = gt_ref[...]
    pred = pred_ref[...]

    # Lane-periodic coefficients (1, 128), broadcast along sublanes:
    #   target = a*gt + c0*gt[l+2] + c1*gt[l-2]
    #   comp 0/1 (x0,y0): 0.5*gt + 0.5*gt[l+2]  -> (x0+x1)/2, (y0+y1)/2
    #   comp 2/3 (x1,y1): 1.0*gt - 1.0*gt[l-2]  -> x1-x0,     y1-y0
    # The wrapped lanes of each roll (lanes 126/127 for +2, lanes 0/1 for -2)
    # land only where their coefficient is exactly 0, so no box ever mixes
    # with its neighbour.
    lane = jax.lax.broadcasted_iota(jnp.int32, (1, _LANES), 1) & 3
    lo = lane < 2
    a = jnp.where(lo, jnp.float32(0.5), jnp.float32(1.0))
    c0 = jnp.where(lo, jnp.float32(0.5), jnp.float32(0.0))
    c1 = jnp.where(lo, jnp.float32(0.0), jnp.float32(-1.0))

    gt_p2 = pltpu.roll(gt, _LANES - 2, 1)   # lane l -> gt[l + 2]
    gt_m2 = pltpu.roll(gt, 2, 1)            # lane l -> gt[l - 2]

    target = a * gt + c0 * gt_p2 + c1 * gt_m2
    # Explicitly zero-padded elements give |0 - 0| = 0.
    err = jnp.abs(pred - target)

    ragged = last_rows != tile_rows   # static: only when the grid is ragged

    if not ragged:
        acc_ref[...] += _fold_to_8(err)
    else:
        @pl.when(i < nt - 1)
        def _acc_full():
            acc_ref[...] += _fold_to_8(err)

        @pl.when(i == nt - 1)
        def _acc_last():
            # Rows past the (sublane-padded) input end hold unspecified VMEM
            # data in the boundary block -- mask them out before folding.
            ridx = jax.lax.broadcasted_iota(jnp.int32, err.shape, 0)
            masked = jnp.where(ridx < last_rows, err, jnp.float32(0.0))
            acc_ref[...] += _fold_to_8(masked)

    @pl.when(i == nt - 1)
    def _finalize():
        acc = acc_ref[...]                               # single (8,128) vreg
        l = jax.lax.broadcasted_iota(jnp.int32, acc.shape, 1) & 3
        inv = jnp.float32(inv_n)
        loss_xx = jnp.sum(jnp.where(l == 0, acc, 0.0)) * inv
        loss_yy = jnp.sum(jnp.where(l == 1, acc, 0.0)) * inv
        loss_ww = jnp.sum(jnp.where(l == 2, acc, 0.0)) * inv
        loss_hh = jnp.sum(jnp.where(l == 3, acc, 0.0)) * inv
        out_ref[0] = loss_xx + loss_yy + loss_ww + loss_hh
        out_ref[1] = loss_xx
        out_ref[2] = loss_yy
        out_ref[3] = loss_ww
        out_ref[4] = loss_hh


def _location_box_loss(gt_box, predicted_vec, *, max_tile_rows=_MAX_TILE_ROWS):
    """gt_box, predicted_vec: (N, 4) arrays.  Returns 5 scalar f32 losses."""
    gt = jnp.asarray(gt_box, jnp.float32)
    pred = jnp.asarray(predicted_vec, jnp.float32)
    n = int(gt.shape[0])
    if n == 0:
        # Same NaN behaviour as torch.mean over an empty tensor.
        nan = jnp.float32(float("nan"))
        return nan, nan, nan, nan, nan

    assert max_tile_rows > 0 and max_tile_rows % _SUBLANES == 0

    elems = 4 * n
    rows = -(-elems // _LANES)                   # ceil(elems / 128)
    rows = -(-rows // _SUBLANES) * _SUBLANES     # round up to a sublane multiple
    pad = rows * _LANES - elems                  # <= 1023 elements

    tile_rows = min(max_tile_rows, rows)
    num_tiles = -(-rows // tile_rows)
    last_rows = rows - (num_tiles - 1) * tile_rows   # rows in (maybe ragged) last tile

    # Flat element-stream view.  When 4*N is a multiple of 1024 (N % 256 == 0)
    # this is a zero-copy reshape; otherwise only a tiny (<1 KiB) zero pad.
    gt_flat = jnp.ravel(gt)
    pred_flat = jnp.ravel(pred)
    if pad:
        gt_flat = jnp.pad(gt_flat, (0, pad))
        pred_flat = jnp.pad(pred_flat, (0, pad))
    gt_flat = gt_flat.reshape(rows, _LANES)
    pred_flat = pred_flat.reshape(rows, _LANES)

    kernel = functools.partial(_box_loss_kernel, inv_n=1.0 / n,
                               last_rows=last_rows)

    out = pl.pallas_call(
        kernel,
        out_shape=jax.ShapeDtypeStruct((5,), jnp.float32),
        grid=(num_tiles,),
        in_specs=[
            pl.BlockSpec((tile_rows, _LANES), lambda i: (i, 0)),
            pl.BlockSpec((tile_rows, _LANES), lambda i: (i, 0)),
        ],
        out_specs=pl.BlockSpec(
            (5,), lambda i: (0,), memory_space=pltpu.MemorySpace.SMEM),
        scratch_shapes=[pltpu.VMEM((_SUBLANES, _LANES), jnp.float32)],
        compiler_params=pltpu.CompilerParams(
            dimension_semantics=("arbitrary",)),
        cost_estimate=pl.CostEstimate(
            flops=32 * n,
            transcendentals=0,
            bytes_accessed=2 * rows * _LANES * 4 + 5 * 4),
    )(gt_flat, pred_flat)

    return out[0], out[1], out[2], out[3], out[4]


# Single dispatch: the ravel / (optional tiny) pad / reshape glue fuses with
# the pallas_call under jit; also removes per-call Python overhead for the
# module's natural tiny-N use.
location_box_loss = jax.jit(_location_box_loss,
                            static_argnames=("max_tile_rows",))


def _reference(gt_box, predicted_vec):
    ww_gt = gt_box[:, 2] - gt_box[:, 0]
    hh_gt = gt_box[:, 3] - gt_box[:, 1]
    xx_gt = (gt_box[:, 2] + gt_box[:, 0]) / 2.0
    yy_gt = (gt_box[:, 3] + gt_box[:, 1]) / 2.0
    lxx = jnp.mean(jnp.abs(predicted_vec[:, 0] - xx_gt))
    lyy = jnp.mean(jnp.abs(predicted_vec[:, 1] - yy_gt))
    lww = jnp.mean(jnp.abs(predicted_vec[:, 2] - ww_gt))
    lhh = jnp.mean(jnp.abs(predicted_vec[:, 3] - hh_gt))
    return lxx + lyy + lww + lhh, lxx, lyy, lww, lhh


def _make_inputs(key, n):
    k1, k2 = jax.random.split(key)
    raw = jax.random.uniform(k1, (n, 4), dtype=jnp.float32)
    x0 = jnp.minimum(raw[:, 0], raw[:, 2])
    x1 = jnp.maximum(raw[:, 0], raw[:, 2])
    y0 = jnp.minimum(raw[:, 1], raw[:, 3])
    y1 = jnp.maximum(raw[:, 1], raw[:, 3])
    gt = jnp.stack([x0, y0, x1, y1], axis=1)            # (n, 4)
    pred = jax.random.normal(k2, (n, 4), dtype=jnp.float32)
    return gt, pred


if __name__ == "__main__":
    key = jax.random.PRNGKey(0)
    ks = jax.random.split(key, 3)

    # Case 1: the module's natural small shape (8 boxes x 4 coords), one tile.
    gt1, pr1 = _make_inputs(ks[0], 8)
    o1 = jax.block_until_ready(location_box_loss(gt1, pr1))
    r1 = _reference(gt1, pr1)
    for o, r in zip(o1, r1):
        assert jnp.allclose(o, r, atol=1e-5, rtol=1e-5), (o, r)

    # Case 2: multi-tile grid with a ragged last tile (rows=24, tile=16) and
    # the small sublane-pad path (N=700 -> 272 padded elements).
    gt2, pr2 = _make_inputs(ks[1], 700)
    o2 = jax.block_until_ready(location_box_loss(gt2, pr2, max_tile_rows=16))
    r2 = _reference(gt2, pr2)
    for o, r in zip(o2, r2):
        assert jnp.allclose(o, r, atol=1e-5, rtol=1e-5), (o, r)

    # Case 3: aligned N (multiple of 256 -> zero host pad), even multi-tile.
    gt3, pr3 = _make_inputs(ks[2], 512)
    o3 = jax.block_until_ready(location_box_loss(gt3, pr3, max_tile_rows=8))
    r3 = _reference(gt3, pr3)
    for o, r in zip(o3, r3):
        assert jnp.allclose(o, r, atol=1e-5, rtol=1e-5), (o, r)

    print("KERNEL_OK")
</pallas_src>

<mosaic_0001>
module attributes {stable_mosaic.version = 11 : i64} {
  func.func @_box_loss_kernel(%arg0: i32, %arg1: memref<8x128xf32, #tpu.memory_space<vmem>>, %arg2: memref<8x128xf32, #tpu.memory_space<vmem>>, %arg3: memref<5xf32, #tpu.memory_space<smem>>, %arg4: memref<8x128xf32, #tpu.memory_space<vmem>>) attributes {dimension_semantics = [#tpu.dimension_semantics<arbitrary>], iteration_bounds = array<i64: 1>, scalar_prefetch = 0 : i64, scratch_operands = 1 : i64, tpu.core_type = #tpu.core_type<tc>, window_params = [{transform_indices = @transform_0, window_bounds = array<i64: 8, 128>}, {transform_indices = @transform_1, window_bounds = array<i64: 8, 128>}, {transform_indices = @transform_2, window_bounds = array<i64: 5>}]} {
    %c0_i32 = arith.constant 0 : i32
    %0 = arith.cmpi eq, %arg0, %c0_i32 : i32
    %1 = arith.extui %0 : i1 to i32
    %c0_i32_0 = arith.constant 0 : i32
    %2 = arith.cmpi ne, %1, %c0_i32_0 : i32
    scf.if %2 {
      %cst_16 = arith.constant 0.000000e+00 : f32
      %37 = vector.broadcast %cst_16 : f32 to vector<8x128xf32>
      %c0_17 = arith.constant 0 : index
      %c0_18 = arith.constant 0 : index
      %38 = vector.load %arg4[%c0_17, %c0_18] : memref<8x128xf32, #tpu.memory_space<vmem>>, vector<8x128xf32>
      tpu.vector_store %arg4[%c0_17, %c0_18], %37 {strides = array<i32>} : memref<8x128xf32, #tpu.memory_space<vmem>>, vector<8x128xf32>,
    } else {
    }
    %c0 = arith.constant 0 : index
    %c0_1 = arith.constant 0 : index
    %3 = vector.load %arg1[%c0, %c0_1] : memref<8x128xf32, #tpu.memory_space<vmem>>, vector<8x128xf32>
    %c0_2 = arith.constant 0 : index
    %c0_3 = arith.constant 0 : index
    %4 = vector.load %arg2[%c0_2, %c0_3] : memref<8x128xf32, #tpu.memory_space<vmem>>, vector<8x128xf32>
    %5 = tpu.iota {dimensions = array<i32: 1>} : vector<1x128xi32>
    %c3_i32 = arith.constant 3 : i32
    %6 = vector.broadcast %c3_i32 : i32 to vector<1x128xi32>
    %7 = arith.andi %5, %6 : vector<1x128xi32>
    %c2_i32 = arith.constant 2 : i32
    %8 = vector.broadcast %c2_i32 : i32 to vector<1x128xi32>
    %9 = arith.cmpi slt, %7, %8 : vector<1x128xi32>
    %cst = arith.constant 5.000000e-01 : f32
    %cst_4 = arith.constant 1.000000e+00 : f32
    %10 = vector.broadcast %cst : f32 to vector<1x128xf32>
    %11 = vector.broadcast %cst_4 : f32 to vector<1x128xf32>
    %12 = arith.select %9, %10, %11 : vector<1x128xi1>, vector<1x128xf32>
    %cst_5 = arith.constant 5.000000e-01 : f32
    %cst_6 = arith.constant 0.000000e+00 : f32
    %13 = vector.broadcast %cst_5 : f32 to vector<1x128xf32>
    %14 = vector.broadcast %cst_6 : f32 to vector<1x128xf32>
    %15 = arith.select %9, %13, %14 : vector<1x128xi1>, vector<1x128xf32>
    %cst_7 = arith.constant 0.000000e+00 : f32
    %cst_8 = arith.constant -1.000000e+00 : f32
    %16 = vector.broadcast %cst_7 : f32 to vector<1x128xf32>
    %17 = vector.broadcast %cst_8 : f32 to vector<1x128xf32>
    %18 = arith.select %9, %16, %17 : vector<1x128xi1>, vector<1x128xf32>
    %c126_i32 = arith.constant 126 : i32
    %19 = tpu.dynamic_rotate %3 by %c126_i32 dim 1 : vector<8x128xf32>, i32 -> vector<8x128xf32>
    %c2_i32_9 = arith.constant 2 : i32
    %20 = tpu.dynamic_rotate %3 by %c2_i32_9 dim 1 : vector<8x128xf32>, i32 -> vector<8x128xf32>
    %21 = vector.broadcast %12 : vector<1x128xf32> to vector<8x128xf32>
    %22 = arith.mulf %21, %3 : vector<8x128xf32>
    %23 = vector.broadcast %15 : vector<1x128xf32> to vector<8x128xf32>
    %24 = arith.mulf %23, %19 : vector<8x128xf32>
    %25 = arith.addf %22, %24 : vector<8x128xf32>
    %26 = vector.broadcast %18 : vector<1x128xf32> to vector<8x128xf32>
    %27 = arith.mulf %26, %20 : vector<8x128xf32>
    %28 = arith.addf %25, %27 : vector<8x128xf32>
    %29 = arith.subf %4, %28 : vector<8x128xf32>
    %30 = math.absf %29 : vector<8x128xf32>
    %c0_10 = arith.constant 0 : index
    %c0_11 = arith.constant 0 : index
    %31 = vector.load %arg4[%c0_10, %c0_11] : memref<8x128xf32, #tpu.memory_space<vmem>>, vector<8x128xf32>
    %32 = arith.addf %31, %30 : vector<8x128xf32>
    %c0_12 = arith.constant 0 : index
    %c0_13 = arith.constant 0 : index
    %33 = vector.load %arg4[%c0_12, %c0_13] : memref<8x128xf32, #tpu.memory_space<vmem>>, vector<8x128xf32>
    tpu.vector_store %arg4[%c0_12, %c0_13], %32 {strides = array<i32>} : memref<8x128xf32, #tpu.memory_space<vmem>>, vector<8x128xf32>,
    %c0_i32_14 = arith.constant 0 : i32
    %34 = arith.cmpi eq, %arg0, %c0_i32_14 : i32
    %35 = arith.extui %34 : i1 to i32
    %c0_i32_15 = arith.constant 0 : i32
    %36 = arith.cmpi ne, %35, %c0_i32_15 : i32
    scf.if %36 {
      %c0_16 = arith.constant 0 : index
      %c0_17 = arith.constant 0 : index
      %37 = vector.load %arg4[%c0_16, %c0_17] : memref<8x128xf32, #tpu.memory_space<vmem>>, vector<8x128xf32>
      %38 = tpu.iota {dimensions = array<i32: 1>} : vector<8x128xi32>
      %c3_i32_18 = arith.constant 3 : i32
      %39 = vector.broadcast %c3_i32_18 : i32 to vector<8x128xi32>
      %40 = arith.andi %38, %39 : vector<8x128xi32>
      %c0_i32_19 = arith.constant 0 : i32
      %41 = vector.broadcast %c0_i32_19 : i32 to vector<8x128xi32>
      %42 = arith.cmpi eq, %40, %41 : vector<8x128xi32>
      %cst_20 = arith.constant 0.000000e+00 : f32
      %43 = vector.broadcast %cst_20 : f32 to vector<8x128xf32>
      %44 = arith.select %42, %37, %43 : vector<8x128xi1>, vector<8x128xf32>
      %45 = vector.shape_cast %44 : vector<8x128xf32> to vector<1x8x128xf32>
      %cst_21 = arith.constant dense<0.000000e+00> : vector<1xf32>
      %46 = vector.multi_reduction <add>, %45, %cst_21 [1, 2] : vector<1x8x128xf32> to vector<1xf32>
      %47 = vector.shape_cast %46 : vector<1xf32> to vector<1x1x1xf32>
      %48 = vector.extract %47[0, 0, 0] : f32 from vector<1x1x1xf32>
      %cst_22 = arith.constant 1.250000e-01 : f32
      %49 = arith.mulf %48, %cst_22 : f32
      %c1_i32 = arith.constant 1 : i32
      %50 = vector.broadcast %c1_i32 : i32 to vector<8x128xi32>
      %51 = arith.cmpi eq, %40, %50 : vector<8x128xi32>
      %cst_23 = arith.constant 0.000000e+00 : f32
      %52 = vector.broadcast %cst_23 : f32 to vector<8x128xf32>
      %53 = arith.select %51, %37, %52 : vector<8x128xi1>, vector<8x128xf32>
      %54 = vector.shape_cast %53 : vector<8x128xf32> to vector<1x8x128xf32>
      %cst_24 = arith.constant dense<0.000000e+00> : vector<1xf32>
      %55 = vector.multi_reduction <add>, %54, %cst_24 [1, 2] : vector<1x8x128xf32> to vector<1xf32>
      %56 = vector.shape_cast %55 : vector<1xf32> to vector<1x1x1xf32>
      %57 = vector.extract %56[0, 0, 0] : f32 from vector<1x1x1xf32>
      %cst_25 = arith.constant 1.250000e-01 : f32
      %58 = arith.mulf %57, %cst_25 : f32
      %c2_i32_26 = arith.constant 2 : i32
      %59 = vector.broadcast %c2_i32_26 : i32 to vector<8x128xi32>
      %60 = arith.cmpi eq, %40, %59 : vector<8x128xi32>
      %cst_27 = arith.constant 0.000000e+00 : f32
      %61 = vector.broadcast %cst_27 : f32 to vector<8x128xf32>
      %62 = arith.select %60, %37, %61 : vector<8x128xi1>, vector<8x128xf32>
      %63 = vector.shape_cast %62 : vector<8x128xf32> to vector<1x8x128xf32>
      %cst_28 = arith.constant dense<0.000000e+00> : vector<1xf32>
      %64 = vector.multi_reduction <add>, %63, %cst_28 [1, 2] : vector<1x8x128xf32> to vector<1xf32>
      %65 = vector.shape_cast %64 : vector<1xf32> to vector<1x1x1xf32>
      %66 = vector.extract %65[0, 0, 0] : f32 from vector<1x1x1xf32>
      %cst_29 = arith.constant 1.250000e-01 : f32
      %67 = arith.mulf %66, %cst_29 : f32
      %c3_i32_30 = arith.constant 3 : i32
      %68 = vector.broadcast %c3_i32_30 : i32 to vector<8x128xi32>
      %69 = arith.cmpi eq, %40, %68 : vector<8x128xi32>
      %cst_31 = arith.constant 0.000000e+00 : f32
      %70 = vector.broadcast %cst_31 : f32 to vector<8x128xf32>
      %71 = arith.select %69, %37, %70 : vector<8x128xi1>, vector<8x128xf32>
      %72 = vector.shape_cast %71 : vector<8x128xf32> to vector<1x8x128xf32>
      %cst_32 = arith.constant dense<0.000000e+00> : vector<1xf32>
      %73 = vector.multi_reduction <add>, %72, %cst_32 [1, 2] : vector<1x8x128xf32> to vector<1xf32>
      %74 = vector.shape_cast %73 : vector<1xf32> to vector<1x1x1xf32>
      %75 = vector.extract %74[0, 0, 0] : f32 from vector<1x1x1xf32>
      %cst_33 = arith.constant 1.250000e-01 : f32
      %76 = arith.mulf %75, %cst_33 : f32
      %77 = arith.addf %49, %58 : f32
      %78 = arith.addf %77, %67 : f32
      %79 = arith.addf %78, %76 : f32
      %c0_34 = arith.constant 0 : index
      %80 = memref.load %arg3[%c0_34] : memref<5xf32, #tpu.memory_space<smem>>
      memref.store %79, %arg3[%c0_34] : memref<5xf32, #tpu.memory_space<smem>>
      %c1 = arith.constant 1 : index
      %81 = memref.load %arg3[%c1] : memref<5xf32, #tpu.memory_space<smem>>
      memref.store %49, %arg3[%c1] : memref<5xf32, #tpu.memory_space<smem>>
      %c2 = arith.constant 2 : index
      %82 = memref.load %arg3[%c2] : memref<5xf32, #tpu.memory_space<smem>>
      memref.store %58, %arg3[%c2] : memref<5xf32, #tpu.memory_space<smem>>
      %c3 = arith.constant 3 : index
      %83 = memref.load %arg3[%c3] : memref<5xf32, #tpu.memory_space<smem>>
      memref.store %67, %arg3[%c3] : memref<5xf32, #tpu.memory_space<smem>>
      %c4 = arith.constant 4 : index
      %84 = memref.load %arg3[%c4] : memref<5xf32, #tpu.memory_space<smem>>
      memref.store %76, %arg3[%c4] : memref<5xf32, #tpu.memory_space<smem>>
    } else {
    }
    return
  }
  func.func @transform_0(%arg0: i32) -> (i32, i32) {
    %c0_i32 = arith.constant 0 : i32
    %c0_i32_0 = arith.constant 0 : i32
    return %arg0, %c0_i32 : i32, i32
  }
  func.func @transform_1(%arg0: i32) -> (i32, i32) {
    %c0_i32 = arith.constant 0 : i32
    %c0_i32_0 = arith.constant 0 : i32
    return %arg0, %c0_i32 : i32, i32
  }
  func.func @transform_2(%arg0: i32) -> i32 {
    %c0_i32 = arith.constant 0 : i32
    %c0_i32_0 = arith.constant 0 : i32
    return %c0_i32 : i32
  }
}

</mosaic_0001>

<llo_original>
// kernel: _location_box_loss.1
$region0: #{_location_box_loss.1}
  #allocation0 [shape = 'u32[]', space=smem, size = 0x4, offset = 0x4, fixed_abs, tag = 'smem constant byte address 0x4 - core index']
  #allocation1 [shape = 'u32[72,128]{1,0:T(1,128)}', space=vmem, size = 0x9000, scoped, tag = 'internal scratch']
  #allocation2 [shape = 'f32[8,128]{1,0:T(8,128)}', space=vmem, size = 0x1000, scoped, tag = 'scratch operand']
  %s0 = inlined_call_operand.vmem [shape: f32[8,128], index: 0, kind: input, shape index: {}]
  %s1 = inlined_call_operand.vmem [shape: f32[8,128], index: 1, kind: input, shape index: {}]
  %s2 = inlined_call_operand.vmem [shape: f32[5], index: 2, kind: output, shape index: {}]
  %s3 = sld [smem:[#allocation0]]
  $region26: #{_location_box_loss.1} parent=0
    _
  %s5 = ssub.s32 1, %s3
  %s6 = scalar_select 0, %s5, %s3
  $region1: #{_location_box_loss.1} parent=0
    #allocation3 [shape = 'u8[512]{0}', space=smem, size = 0x200, scoped, tag = 'output window, operand 0, single buffered']
    #allocation4 [shape = 's32[1]{0}', space=sflag, size = 0x4, scoped, tag = 'scoped memory for _location_box_loss.1']
    %7 = vsyncpa [#allocation4], 0
    // Predicated region
    $region2: #{_location_box_loss.1} parent=1 // pred_check
      _
    $region3: #{_location_box_loss.1} parent=1 // pred_check_branch
      %9 = sbr.rel (0) target = $region5
    $region4: #{_location_box_loss.1} parent=1 // pred_region
      _
    $region5: #{_location_box_loss.1} parent=1 // pred_fallthru
      _
    // Predicated region
    $region6: #{_location_box_loss.1} parent=1 // pred_check
      _
    $region7: #{_location_box_loss.1} parent=1 // pred_check_branch
      %11 = sbr.rel (0) target = $region9
    $region8: #{_location_box_loss.1} parent=1 // pred_region
      _
    $region9: #{_location_box_loss.1} parent=1 // pred_fallthru
      _
    %p12 = scmp.eq.s32.totalorder 0, 0
    // Predicated region
    $region10: #{_location_box_loss.1} parent=1 // pred_check
      %p13 = pneg %p12
    $region11: #{_location_box_loss.1} parent=1 // pred_check_branch
      %15 = sbr.rel (%p13) target = $region13
    $region12: #{_location_box_loss.1} parent=1 // pred_region
      %16 = vst [vmem:[#allocation2] sm:$0xff] 0.0
    $region13: #{_location_box_loss.1} parent=1 // pred_fallthru
      _
    %v17 = vld [vmem:[%s0] sm:$0xff]
    %v18 = vld [vmem:[%s1] sm:$0xff]
    %v19 = vlaneseq
    %v20 = vand.u32 %v19, 127
    %v21 = vand.u32 %v20, 3
    %vm22 = vcmp.lt.s32.totalorder %v21, 2
    %v23 = vsel %vm22, 0.5, 1.0
    %v24 = vsel %vm22, 0.5, 0.0
    %v25 = vsel %vm22, 0.0, -1.0
    %26 = vrot.lane.b32.xlu0 %v17, 126
    %v27 = vpop.permute.xlu0 %26
    %28 = vrot.lane.b32.xlu0 %v17, 2
    %v29 = vpop.permute.xlu0 %28
    %v30 = vmul.f32 %v23, %v17
    %v31 = vmul.f32 %v24, %v27
    %v32 = vadd.f32 %v30, %v31
    %v33 = vmul.f32 %v25, %v29
    %v34 = vadd.f32 %v32, %v33
    %v35 = vsub.f32 %v18, %v34
    %v36 = vand.u32 2147483647, %v35
    %v37 = vld [vmem:[#allocation2] sm:$0xff]
    %v38 = vadd.f32 %v37, %v36
    %39 = vst [vmem:[#allocation2] sm:$0xff] %v38
    // Predicated region
    $region14: #{_location_box_loss.1} parent=1 // pred_check
      %p40 = pneg %p12
    $region15: #{_location_box_loss.1} parent=1 // pred_check_branch
      %42 = sbr.rel (%p40) target = $region17
    $region16: #{_location_box_loss.1} parent=1 // pred_region
      %v43 = vld [vmem:[#allocation2] sm:$0xff]
      %vm44 = vcmp.eq.s32.totalorder %v21, 0
      %v45 = vsel %vm44, %v43, 0.0
      %46 = vadd.xlane.f32.xlu0 %v45
      %v47 = vpop.xlane.xlu0 %46
      %v48 = vrot.slane %v47, 4
      %v49 = vadd.f32 %v47, %v48
      %v50 = vrot.slane %v49, 2
      %v51 = vadd.f32 %v49, %v50
      %v52 = vrot.slane %v51, 1
      %v53 = vadd.f32 %v51, %v52
      %s54 = vtos %v53
      %s55 = smul.f32 %s54, 0.125
      %vm56 = vcmp.eq.s32.totalorder %v21, 1
      %v57 = vsel %vm56, %v43, 0.0
      %58 = vadd.xlane.f32.xlu0 %v57
      %v59 = vpop.xlane.xlu0 %58
      %v60 = vrot.slane %v59, 4
      %v61 = vadd.f32 %v59, %v60
      %v62 = vrot.slane %v61, 2
      %v63 = vadd.f32 %v61, %v62
      %v64 = vrot.slane %v63, 1
      %v65 = vadd.f32 %v63, %v64
      %s66 = vtos %v65
      %s67 = smul.f32 %s66, 0.125
      %vm68 = vcmp.eq.s32.totalorder %v21, 2
      %v69 = vsel %vm68, %v43, 0.0
      %70 = vadd.xlane.f32.xlu0 %v69
      %v71 = vpop.xlane.xlu0 %70
      %v72 = vrot.slane %v71, 4
      %v73 = vadd.f32 %v71, %v72
      %v74 = vrot.slane %v73, 2
      %v75 = vadd.f32 %v73, %v74
      %v76 = vrot.slane %v75, 1
      %v77 = vadd.f32 %v75, %v76
      %s78 = vtos %v77
      %s79 = smul.f32 %s78, 0.125
      %vm80 = vcmp.eq.s32.totalorder %v21, 3
      %v81 = vsel %vm80, %v43, 0.0
      %82 = vadd.xlane.f32.xlu0 %v81
      %v83 = vpop.xlane.xlu0 %82
      %v84 = vrot.slane %v83, 4
      %v85 = vadd.f32 %v83, %v84
      %v86 = vrot.slane %v85, 2
      %v87 = vadd.f32 %v85, %v86
      %v88 = vrot.slane %v87, 1
      %v89 = vadd.f32 %v87, %v88
      %s90 = vtos %v89
      %s91 = smul.f32 %s90, 0.125
      %s92 = sadd.f32 %s55, %s67
      %s93 = sadd.f32 %s92, %s79
      %s94 = sadd.f32 %s93, %s91
      %s95 = scalar_lea.smem [#allocation3], 0
      %96 = sst [smem:[%s95]] %s94
      %s97 = scalar_lea.smem [#allocation3], 1
      %98 = sst [smem:[%s97]] %s55
      %s99 = scalar_lea.smem [#allocation3], 2
      %100 = sst [smem:[%s99]] %s67
      %s101 = scalar_lea.smem [#allocation3], 3
      %102 = sst [smem:[%s101]] %s79
      %s103 = scalar_lea.smem [#allocation3], 4
      %104 = sst [smem:[%s103]] %s91
    $region17: #{_location_box_loss.1} parent=1 // pred_fallthru
      _
    // Predicated region
    $region18: #{_location_box_loss.1} parent=1 // pred_check
      _
    $region19: #{_location_box_loss.1} parent=1 // pred_check_branch
      %106 = sbr.rel (0) target = $region21
    $region20: #{_location_box_loss.1} parent=1 // pred_region
      %108 = vsyncadd [#allocation4], 0
      %s110 = sshll.u32 %s2, 4
      %s111 = int_to_ptr.vmem [resolvable:$true] %s110
      %113 = dma.smem_to_vmem [#allocation3], 16, %s111, [#allocation4]
    $region21: #{_location_box_loss.1} parent=1 // pred_fallthru
      _
    // Predicated region
    $region22: #{_location_box_loss.1} parent=1 // pred_check
      _
    $region23: #{_location_box_loss.1} parent=1 // pred_check_branch
      %115 = sbr.rel (0) target = $region25
    $region24: #{_location_box_loss.1} parent=1 // pred_region
      %117 = dma.done [#allocation4], 16
    $region25: #{_location_box_loss.1} parent=1 // pred_fallthru
      _
    %118 = sfence
    %119 = vsyncpa [#allocation4], 1

</llo_original>
